<compile_context>
chip_gen: v7x
topology: tpu7x:2x2x1
jax: 0.10.0
libtpu: 0.0.40
codegen_flags: <defaults>
</compile_context>

<pallas_src>
import jax
import jax.numpy as jnp
from jax.experimental import pallas as pl
from jax.experimental.pallas import tpu as pltpu


# ----------------------------- helpers --------------------------------------

def _round_up(x, m):
    return ((x + m - 1) // m) * m


def _pick_tk(kp, cap=1024):
    """Single K step whenever Kp <= cap; else largest multiple of 128 <= cap
    that divides Kp."""
    if kp <= cap:
        return kp
    best = 128
    t = 256
    while t <= cap:
        if kp % t == 0:
            best = t
        t += 128
    return best


def _pick_tm(m, cap=1024, min_tiles=2):
    """M tile: multiple of 16 (bf16 sublane packing), capped at `cap`, and
    small enough to give >= min_tiles tiles (v7x megacore sharding)."""
    tm = _round_up(max(1, -(-m // min_tiles)), 16)
    tm = min(cap, tm)
    return tm, _round_up(m, tm)


# ----------------------------- Pallas kernels -------------------------------

def _epilogue(acc, s_ref, b_ref, relu, w2_ref, s2_ref, b2_ref, other_ref, o_dtype):
    """Folded-BN affine (+ optional fused 1x1 conv, residual, ReLU) in f32."""
    res = acc * s_ref[...] + b_ref[...]
    if w2_ref is not None:                      # fused second 1x1 conv + its BN
        res = jnp.dot(res.astype(jnp.bfloat16), w2_ref[...],
                      preferred_element_type=jnp.float32)
        res = res * s2_ref[...] + b2_ref[...]
    if other_ref is not None:                   # fused residual (e.g. + crop)
        res = res + other_ref[...]
    if relu:
        res = jnp.maximum(res, 0.0)
    return res.astype(o_dtype)


def _make_single_k_kernel(relu, has_other, has_fuse2):
    """Whole-K matmul + epilogue, no accumulator scratch."""

    def kernel(*refs):
        refs = list(refs)
        x_ref, w_ref, s_ref, b_ref = refs[:4]
        refs = refs[4:]
        w2_ref = s2_ref = b2_ref = other_ref = None
        if has_fuse2:
            w2_ref, s2_ref, b2_ref = refs[:3]
            refs = refs[3:]
        if has_other:
            other_ref = refs.pop(0)
        o_ref = refs.pop(0)

        acc = jnp.dot(x_ref[...], w_ref[...], preferred_element_type=jnp.float32)
        o_ref[...] = _epilogue(acc, s_ref, b_ref, relu,
                               w2_ref, s2_ref, b2_ref, other_ref, o_ref.dtype)

    return kernel


def _make_multi_k_kernel(relu, has_other, has_fuse2):
    """K-looped matmul with f32 VMEM accumulator; epilogue on the last K step."""

    def kernel(*refs):
        refs = list(refs)
        x_ref, w_ref, s_ref, b_ref = refs[:4]
        refs = refs[4:]
        w2_ref = s2_ref = b2_ref = other_ref = None
        if has_fuse2:
            w2_ref, s2_ref, b2_ref = refs[:3]
            refs = refs[3:]
        if has_other:
            other_ref = refs.pop(0)
        o_ref = refs.pop(0)
        acc_ref = refs.pop(0)

        k = pl.program_id(1)

        @pl.when(k == 0)
        def _():
            acc_ref[...] = jnp.zeros_like(acc_ref)

        acc_ref[...] += jnp.dot(x_ref[...], w_ref[...],
                                preferred_element_type=jnp.float32)

        @pl.when(k == pl.num_programs(1) - 1)
        def _():
            o_ref[...] = _epilogue(acc_ref[...], s_ref, b_ref, relu,
                                   w2_ref, s2_ref, b2_ref, other_ref,
                                   o_ref.dtype)

    return kernel


def _mask_mul_kernel(crop_ref, f_ref, o_ref):
    # y = (1 - sigmoid(crop)) * f.  1/(1+exp(x)) overflows exp for x >~ 88 but
    # saturates to the correct limit 0, so it is benign; math stays f32.
    gate = 1.0 / (1.0 + jnp.exp(crop_ref[...]))
    o_ref[...] = (gate * f_ref[...]).astype(o_ref.dtype)


# ----------------------------- Pallas wrappers ------------------------------

def conv_bn_pallas(patches, layer, *, relu=False, other=None, fuse2=None,
                   out_dtype=jnp.bfloat16):
    """patches: (M, K).  Returns (M, cout) = epilogue(patches @ W)."""
    m, k = patches.shape
    w_pad = layer["w_pad"]                      # (Kp, Np) bf16, zero padded
    kp, np_ = w_pad.shape

    tm, m_pad = _pick_tm(m)
    tk = _pick_tk(kp)
    single_k = (tk == kp)

    has_fuse2 = fuse2 is not None
    has_other = other is not None
    out_np = fuse2["w2_pad"].shape[1] if has_fuse2 else np_
    cout = fuse2["cout"] if has_fuse2 else layer["cout"]

    xp = patches.astype(jnp.bfloat16)
    if m_pad != m or kp != k:
        xp = jnp.pad(xp, ((0, m_pad - m), (0, kp - k)))

    args = [xp, w_pad, layer["scale_pad"], layer["shift_pad"]]
    if has_fuse2:
        args += [fuse2["w2_pad"], fuse2["scale_pad"], fuse2["shift_pad"]]
    if has_other:
        args.append(jnp.pad(other.astype(jnp.float32),
                            ((0, m_pad - other.shape[0]),
                             (0, out_np - other.shape[1]))))

    if single_k:
        grid = (m_pad // tm,)
        dims = ("parallel",)
        scratch = []
        m_blk = lambda i: (i, 0)
        k_blk = lambda i: (0, 0)
        x_spec = pl.BlockSpec((tm, kp), lambda i: (i, 0))
        w_spec = pl.BlockSpec((kp, np_), lambda i: (0, 0))
    else:
        grid = (m_pad // tm, kp // tk)
        dims = ("parallel", "arbitrary")
        scratch = [pltpu.VMEM((tm, np_), jnp.float32)]
        m_blk = lambda i, kk: (i, 0)
        k_blk = lambda i, kk: (0, 0)
        x_spec = pl.BlockSpec((tm, tk), lambda i, kk: (i, kk))
        w_spec = pl.BlockSpec((tk, np_), lambda i, kk: (kk, 0))

    in_specs = [x_spec, w_spec,
                pl.BlockSpec((1, np_), k_blk),
                pl.BlockSpec((1, np_), k_blk)]
    if has_fuse2:
        in_specs += [pl.BlockSpec((np_, out_np), k_blk),
                     pl.BlockSpec((1, out_np), k_blk),
                     pl.BlockSpec((1, out_np), k_blk)]
    if has_other:
        in_specs.append(pl.BlockSpec((tm, out_np), m_blk))

    kernel = (_make_single_k_kernel if single_k else _make_multi_k_kernel)(
        relu, has_other, has_fuse2)

    out = pl.pallas_call(
        kernel,
        out_shape=jax.ShapeDtypeStruct((m_pad, out_np), out_dtype),
        grid_spec=pltpu.PrefetchScalarGridSpec(
            num_scalar_prefetch=0,
            grid=grid,
            in_specs=in_specs,
            out_specs=pl.BlockSpec((tm, out_np), m_blk),
            scratch_shapes=scratch,
        ),
        compiler_params=pltpu.CompilerParams(dimension_semantics=dims),
    )(*args)
    return out[:m, :cout]


def mask_mul_pallas(crop2d, f2d):
    """crop2d: (M, 1) f32, f2d: (M, C) f32 -> bf16 (1 - sigmoid(crop)) * f.
    At production C is a multiple of 128 (lane-dense stores); the tiny test
    C=4 falls into the full-dim exception and uses masked stores."""
    m, c = f2d.shape
    tm, m_pad = _pick_tm(m)
    cp = jnp.pad(crop2d.astype(jnp.float32), ((0, m_pad - m), (0, 0)))
    fp = jnp.pad(f2d.astype(jnp.float32), ((0, m_pad - m), (0, 0)))
    out = pl.pallas_call(
        _mask_mul_kernel,
        out_shape=jax.ShapeDtypeStruct((m_pad, c), jnp.bfloat16),
        grid_spec=pltpu.PrefetchScalarGridSpec(
            num_scalar_prefetch=0,
            grid=(m_pad // tm,),
            in_specs=[pl.BlockSpec((tm, 1), lambda i: (i, 0)),
                      pl.BlockSpec((tm, c), lambda i: (i, 0))],
            out_specs=pl.BlockSpec((tm, c), lambda i: (i, 0)),
        ),
        compiler_params=pltpu.CompilerParams(dimension_semantics=("parallel",)),
    )(cp, fp)
    return out[:m]


# ------------------------------ glue (JAX) -----------------------------------

def _im2col(x, kh, kw, ph, pw):
    """x: NHWC -> (N*H*W, kh*kw*C) patches. stride 1, dilation 1.
    TODO(synk): replace with in-kernel halo row-strip patch assembly for 3x3."""
    n, h, w, c = x.shape
    xp = jnp.pad(x, ((0, 0), (ph, ph), (pw, pw), (0, 0)))
    cols = [xp[:, i:i + h, j:j + w, :] for i in range(kh) for j in range(kw)]
    return jnp.concatenate(cols, axis=-1).reshape(n * h * w, kh * kw * c)


def make_basic_conv2d(key, cin, cout, ksize, pad):
    """Synthetic deterministic params for Conv2d(bias=False)+BatchNorm2d (eval)."""
    k_w, k_b, k_m, k_v, k_g = jax.random.split(key, 5)
    fan_in = ksize * ksize * cin
    w_hwio = jax.random.normal(k_w, (ksize, ksize, cin, cout), jnp.float32) \
        / jnp.sqrt(jnp.float32(fan_in))
    gamma = jax.random.uniform(k_g, (cout,), jnp.float32, 0.5, 1.5)
    beta = jax.random.normal(k_b, (cout,), jnp.float32) * 0.1
    r_mean = jax.random.normal(k_m, (cout,), jnp.float32) * 0.1
    r_var = jax.random.uniform(k_v, (cout,), jnp.float32, 0.5, 1.5)
    eps = 1e-5
    scale = gamma / jnp.sqrt(r_var + eps)          # fold eval-mode BN:
    shift = beta - r_mean * scale                  # y = conv(x)*scale + shift

    K = ksize * ksize * cin
    Kp = _round_up(K, 128)                         # lane/sublane-friendly pads
    Np = _round_up(cout, 128)                      # lane-dense MXU N / stores
    w_mat = w_hwio.reshape(K, cout)
    w_pad = jnp.zeros((Kp, Np), jnp.float32).at[:K, :cout].set(w_mat)
    return dict(
        w_hwio=w_hwio,
        w_pad=w_pad.astype(jnp.bfloat16),
        scale=scale, shift=shift,
        scale_pad=jnp.zeros((1, Np), jnp.float32).at[0, :cout].set(scale),
        shift_pad=jnp.zeros((1, Np), jnp.float32).at[0, :cout].set(shift),
        cout=cout,
        cfg=(ksize, ksize, pad, pad),
    )


def _make_gd2_fused(gd1, gd2):
    """Pack gd_conv2 (1x1) so it can run as a second dot in gd_conv1's epilogue."""
    np1 = gd1["w_pad"].shape[1]                    # padded N of gd_conv1 (128)
    c1 = gd1["cout"]                               # 64
    c2 = gd2["cout"]                               # 1
    np2 = _round_up(c2, 128)
    W2 = gd2["w_hwio"].reshape(c1, c2)
    w2_pad = jnp.zeros((np1, np2), jnp.float32).at[:c1, :c2].set(W2)
    return dict(
        w2_pad=w2_pad.astype(jnp.bfloat16),
        scale_pad=jnp.zeros((1, np2), jnp.float32).at[0, :c2].set(gd2["scale"]),
        shift_pad=jnp.zeros((1, np2), jnp.float32).at[0, :c2].set(gd2["shift"]),
        cout=c2,
    )


def _fuse_ra1_weight(ra1, in_channel, groups=4):
    """ra_conv1 originally consumes (xs0, y, xs1, y, xs2, y, xs3, y).  Permute
    its weight rows (and sum the 4 identical y-rows) so the Pallas path can use
    the dense concat [f, y] instead — identical math, cheaper glue."""
    c4 = in_channel // groups
    mid = ra1["cout"]
    W = ra1["w_hwio"].reshape(in_channel + groups, mid)
    f_rows = jnp.concatenate(
        [W[g * (c4 + 1): g * (c4 + 1) + c4] for g in range(groups)], axis=0)
    y_row = sum(W[t * (c4 + 1) + c4] for t in range(groups))
    Wf = jnp.concatenate([f_rows, y_row[None, :]], axis=0)     # (c+1, mid)
    K = in_channel + 1
    Kp = _round_up(K, 128)
    Np = ra1["w_pad"].shape[1]
    w_pad = jnp.zeros((Kp, Np), jnp.float32).at[:K, :mid].set(Wf)
    ra1["w_pad"] = w_pad.astype(jnp.bfloat16)
    return ra1


def apply_conv_bn(layer, x_nhwc, *, relu=False, other_nhwc=None, fuse2=None,
                  out_dtype=jnp.bfloat16):
    kh, kw, ph, pw = layer["cfg"]
    n, h, w, cin = x_nhwc.shape
    if kh == 1 and kw == 1:
        patches = x_nhwc.reshape(n * h * w, cin)
    else:
        patches = _im2col(x_nhwc, kh, kw, ph, pw)
    other2d = None
    if other_nhwc is not None:
        other2d = other_nhwc.reshape(n * h * w, other_nhwc.shape[-1])
    y = conv_bn_pallas(patches, layer, relu=relu, other=other2d, fuse2=fuse2,
                       out_dtype=out_dtype)
    cout = fuse2["cout"] if fuse2 is not None else layer["cout"]
    return y.reshape(n, h, w, cout)


def init_reverse_guided(key, in_channel):
    # group-4 path (in_channel != 2048)
    assert in_channel != 2048, "group-8 path not implemented"
    mid = 64
    ks = jax.random.split(key, 6)
    P = {}
    P["gd_conv1"] = make_basic_conv2d(ks[0], in_channel, mid, 3, 1)
    P["gd_conv2"] = make_basic_conv2d(ks[1], mid, 1, 1, 0)
    P["ra_conv1"] = make_basic_conv2d(ks[2], in_channel + 4, mid, 1, 0)
    P["ra_conv2"] = make_basic_conv2d(ks[3], mid, mid, 3, 1)
    P["ra_conv3"] = make_basic_conv2d(ks[4], mid, mid, 3, 1)
    P["ra_conv4"] = make_basic_conv2d(ks[5], mid, 1, 3, 1)
    # Pallas-path weight rearrangements (identical math):
    P["gd2_fused"] = _make_gd2_fused(P["gd_conv1"], P["gd_conv2"])
    P["ra_conv1"] = _fuse_ra1_weight(P["ra_conv1"], in_channel, groups=4)
    return P


def reverse_guided_forward(f_nchw, crop_nchw, P):
    f = jnp.transpose(f_nchw, (0, 2, 3, 1))        # NCHW -> NHWC
    crop = jnp.transpose(crop_nchw, (0, 2, 3, 1))  # (N,H,W,1)
    n, h, w, c = f.shape
    assert c % 4 == 0, "group-4 path expects channels divisible by 4"
    m = n * h * w

    # y = (1 - sigmoid(crop)).expand(C) * f   (fused elementwise kernel, bf16 out)
    y_in = mask_mul_pallas(crop.reshape(m, 1), f.reshape(m, c)).reshape(n, h, w, c)

    # gd_conv1 (3x3) with gd_conv2 (1x1, 64->1) fused into its epilogue.
    y = apply_conv_bn(P["gd_conv1"], y_in, fuse2=P["gd2_fused"])   # (n,h,w,1)

    # Reordered concat [f, y]; ra_conv1's weight rows were permuted (+ summed
    # y-rows) at init time so this matches the PyTorch interleaved concat.
    x_cat = jnp.concatenate([f.astype(jnp.bfloat16), y], axis=-1)  # (n,h,w,c+1)

    x = apply_conv_bn(P["ra_conv1"], x_cat)                        # 1x1 conv+BN
    x = apply_conv_bn(P["ra_conv2"], x, relu=True)                 # fused ReLU
    x = apply_conv_bn(P["ra_conv3"], x, relu=True)                 # fused ReLU
    out = apply_conv_bn(P["ra_conv4"], x, other_nhwc=crop,
                        out_dtype=jnp.float32)                     # fused +crop
    return jnp.transpose(out, (0, 3, 1, 2))        # NHWC -> NCHW


# -------------------------- pure-JAX reference -------------------------------

def _ref_conv_bn(layer, x_nhwc):
    kh, kw, ph, pw = layer["cfg"]
    y = jax.lax.conv_general_dilated(
        x_nhwc, layer["w_hwio"], (1, 1),
        padding=[(ph, ph), (pw, pw)],
        dimension_numbers=("NHWC", "HWIO", "NHWC"))
    return y * layer["scale"].reshape(1, 1, 1, -1) + layer["shift"].reshape(1, 1, 1, -1)


def reverse_guided_ref(f_nchw, crop_nchw, P):
    f = jnp.transpose(f_nchw, (0, 2, 3, 1))
    crop = jnp.transpose(crop_nchw, (0, 2, 3, 1))
    y = (1.0 - jax.nn.sigmoid(crop)) * f
    y = _ref_conv_bn(P["gd_conv1"], y)
    y = _ref_conv_bn(P["gd_conv2"], y)
    c = f.shape[-1]
    c4 = c // 4
    parts = []
    for g in range(4):
        parts += [f[..., g * c4:(g + 1) * c4], y]
    x_cat = jnp.concatenate(parts, axis=-1)
    x = _ref_conv_bn(P["ra_conv1"], x_cat)
    x = jnp.maximum(_ref_conv_bn(P["ra_conv2"], x), 0.0)
    x = jnp.maximum(_ref_conv_bn(P["ra_conv3"], x), 0.0)
    ra_feat = _ref_conv_bn(P["ra_conv4"], x)
    out = ra_feat + crop
    return jnp.transpose(out, (0, 3, 1, 2))


# --------------------------------- main ---------------------------------------

if __name__ == "__main__":
    key = jax.random.PRNGKey(0)
    kf, kc, kparam = jax.random.split(key, 3)

    B, C_IN, H, W = 2, 4, 16, 16
    f = jax.random.normal(kf, (B, C_IN, H, W), jnp.float32)      # NCHW, like PyTorch
    crop = jax.random.normal(kc, (B, 1, H, W), jnp.float32)
    params = init_reverse_guided(kparam, C_IN)

    out = jax.block_until_ready(reverse_guided_forward(f, crop, params))
    assert out.shape == (B, 1, H, W), out.shape

    ref = jax.block_until_ready(reverse_guided_ref(f, crop, params))
    # bf16 MXU operands AND bf16 inter-layer activations (f32 accumulation /
    # epilogues): typical max relative error ~1-2e-2; final +crop stays f32.
    err = float(jnp.max(jnp.abs(out - ref) / (jnp.abs(ref) + 1.0)))
    assert err < 8e-2, f"mismatch vs reference: {err}"

    print("KERNEL_OK")
</pallas_src>

<mosaic_0001>
module attributes {stable_mosaic.version = 11 : i64} {
  func.func @_mask_mul_kernel(%arg0: i32, %arg1: memref<256x1xf32, #tpu.memory_space<vmem>>, %arg2: memref<256x4xf32, #tpu.memory_space<vmem>>, %arg3: memref<256x4xbf16, #tpu.memory_space<vmem>>) attributes {dimension_semantics = [#tpu.dimension_semantics<parallel>], iteration_bounds = array<i64: 2>, scalar_prefetch = 0 : i64, scratch_operands = 0 : i64, tpu.core_type = #tpu.core_type<tc>, window_params = [{transform_indices = @transform_0, window_bounds = array<i64: 256, 1>}, {transform_indices = @transform_1, window_bounds = array<i64: 256, 4>}, {transform_indices = @transform_2, window_bounds = array<i64: 256, 4>}]} {
    %c0 = arith.constant 0 : index
    %c0_0 = arith.constant 0 : index
    %0 = vector.load %arg1[%c0, %c0_0] : memref<256x1xf32, #tpu.memory_space<vmem>>, vector<256x1xf32>
    %1 = math.exp %0 : vector<256x1xf32>
    %cst = arith.constant 1.000000e+00 : f32
    %2 = vector.broadcast %cst : f32 to vector<256x1xf32>
    %3 = arith.addf %2, %1 : vector<256x1xf32>
    %cst_1 = arith.constant 1.000000e+00 : f32
    %4 = vector.broadcast %cst_1 : f32 to vector<256x1xf32>
    %5 = arith.divf %4, %3 : vector<256x1xf32>
    %c0_2 = arith.constant 0 : index
    %c0_3 = arith.constant 0 : index
    %6 = vector.load %arg2[%c0_2, %c0_3] : memref<256x4xf32, #tpu.memory_space<vmem>>, vector<256x4xf32>
    %7 = vector.broadcast %5 : vector<256x1xf32> to vector<256x4xf32>
    %8 = arith.mulf %7, %6 : vector<256x4xf32>
    %9 = arith.truncf %8 : vector<256x4xf32> to vector<256x4xbf16>
    %c0_4 = arith.constant 0 : index
    %c0_5 = arith.constant 0 : index
    %10 = vector.load %arg3[%c0_4, %c0_5] : memref<256x4xbf16, #tpu.memory_space<vmem>>, vector<256x4xbf16>
    tpu.vector_store %arg3[%c0_4, %c0_5], %9 {strides = array<i32>} : memref<256x4xbf16, #tpu.memory_space<vmem>>, vector<256x4xbf16>,
    return
  }
  func.func @transform_0(%arg0: i32) -> (i32, i32) {
    %c0_i32 = arith.constant 0 : i32
    %c0_i32_0 = arith.constant 0 : i32
    return %arg0, %c0_i32 : i32, i32
  }
  func.func @transform_1(%arg0: i32) -> (i32, i32) {
    %c0_i32 = arith.constant 0 : i32
    %c0_i32_0 = arith.constant 0 : i32
    return %arg0, %c0_i32 : i32, i32
  }
  func.func @transform_2(%arg0: i32) -> (i32, i32) {
    %c0_i32 = arith.constant 0 : i32
    %c0_i32_0 = arith.constant 0 : i32
    return %arg0, %c0_i32 : i32, i32
  }
}

</mosaic_0001>

<llo_original>
// kernel: tpu_custom_call.1
$region0: #{tpu_custom_call.1}
  #allocation0 [shape = 'u32[]', space=smem, size = 0x4, offset = 0x4, fixed_abs, tag = 'smem constant byte address 0x4 - core index']
  #allocation1 [shape = 'u32[144,128]{1,0:T(1,128)}', space=vmem, size = 0x12000, scoped, tag = 'internal scratch']
  %s0 = inlined_call_operand.vmem [shape: f32[512,1], index: 0, kind: input, shape index: {}]
  %s1 = inlined_call_operand.vmem [shape: f32[512,4], index: 1, kind: input, shape index: {}]
  %s2 = inlined_call_operand.vmem [shape: bf16[512,4], index: 2, kind: output, shape index: {}]
  %s3 = sld [smem:[#allocation0]]
  $region41: #{tpu_custom_call.1} parent=0
    _
  %s5 = ssub.s32 1, %s3
  %s6 = scalar_select 0, %s5, %s3
  loop: start=0, step=1, limit=4
  $region2: #{tpu_custom_call.1} parent=0 // loop_pre_header
    _
  $region3: #{tpu_custom_call.1} parent=0 // loop_header
    %s8 = sphi 0, %s12
    %p9 = scmp.ge.s32.totalorder %s8, 4
    %s18 = sphi 0, %s20
    %s21 = sphi 0, %s18
    %s22 = sphi 0, %s21
    %s38 = sphi 0, %s22
    %s44 = sphi 0, %s46
    %s47 = sphi 0, %s44
    %s48 = sphi 0, %s47
    %s64 = sphi 0, %s48
    %s70 = sphi 0, %s72
    %s73 = sphi 0, %s70
    %s74 = sphi 0, %s73
    %s90 = sphi 0, %s74
  $region4: #{tpu_custom_call.1} parent=0 // loop_header_branch
    %11 = sbr.rel (%p9) target = $region8
  $region5: #{tpu_custom_call.1} parent=0 // loop_body
    %s13 = ssub.s32 %s8, 1
    %s14 = ssub.s32 %s8, 2
    %s15 = sadd.s32 %s8, 1
    %s16 = ssub.s32 %s8, %s15
    %p17 = scmp.eq.s32.totalorder %s16, 0
    %s19 = sadd.s32 %s18, 1
    %s20 = scalar_select %p17, %s18, %s19
    %p23 = pneg %p17
    %p24 = scmp.eq.s32.totalorder %s8, 1
    %p25 = por %p23, %p24
    %p26 = scmp.ne.s32.totalorder %s18, %s21
    %p27 = scmp.eq.s32.totalorder %s8, 0
    %p28 = por %p26, %p27
    %p29 = scmp.ne.s32.totalorder %s18, %s21
    %p30 = scmp.eq.s32.totalorder %s13, 1
    %p31 = por %p29, %p30
    %p32 = scmp.ne.s32.totalorder %s21, %s22
    %p33 = scmp.eq.s32.totalorder %s13, 0
    %p34 = por %p32, %p33
    %p35 = scmp.ne.s32.totalorder %s21, %s22
    %p36 = scmp.eq.s32.totalorder %s14, 1
    %p37 = por %p35, %p36
    %p39 = scmp.ne.s32.totalorder %s22, %s38
    %p40 = scmp.eq.s32.totalorder %s14, 0
    %p41 = por %p39, %p40
    %s42 = ssub.s32 %s8, %s15
    %p43 = scmp.eq.s32.totalorder %s42, 0
    %s45 = sadd.s32 %s44, 1
    %s46 = scalar_select %p43, %s44, %s45
    %p49 = pneg %p43
    %p50 = scmp.eq.s32.totalorder %s8, 1
    %p51 = por %p49, %p50
    %p52 = scmp.ne.s32.totalorder %s44, %s47
    %p53 = scmp.eq.s32.totalorder %s8, 0
    %p54 = por %p52, %p53
    %p55 = scmp.ne.s32.totalorder %s44, %s47
    %p56 = scmp.eq.s32.totalorder %s13, 1
    %p57 = por %p55, %p56
    %p58 = scmp.ne.s32.totalorder %s47, %s48
    %p59 = scmp.eq.s32.totalorder %s13, 0
    %p60 = por %p58, %p59
    %p61 = scmp.ne.s32.totalorder %s47, %s48
    %p62 = scmp.eq.s32.totalorder %s14, 1
    %p63 = por %p61, %p62
    %p65 = scmp.ne.s32.totalorder %s48, %s64
    %p66 = scmp.eq.s32.totalorder %s14, 0
    %p67 = por %p65, %p66
    %s68 = ssub.s32 %s8, %s15
    %p69 = scmp.eq.s32.totalorder %s68, 0
    %s71 = sadd.s32 %s70, 1
    %s72 = scalar_select %p69, %s70, %s71
    %p75 = pneg %p69
    %p76 = scmp.eq.s32.totalorder %s8, 1
    %p77 = por %p75, %p76
    %p78 = scmp.ne.s32.totalorder %s70, %s73
    %p79 = scmp.eq.s32.totalorder %s8, 0
    %p80 = por %p78, %p79
    %p81 = scmp.ne.s32.totalorder %s70, %s73
    %p82 = scmp.eq.s32.totalorder %s13, 1
    %p83 = por %p81, %p82
    %p84 = scmp.ne.s32.totalorder %s73, %s74
    %p85 = scmp.eq.s32.totalorder %s13, 0
    %p86 = por %p84, %p85
    %p87 = scmp.ne.s32.totalorder %s73, %s74
    %p88 = scmp.eq.s32.totalorder %s14, 1
    %p89 = por %p87, %p88
    %p91 = scmp.ne.s32.totalorder %s74, %s90
    %p92 = scmp.eq.s32.totalorder %s14, 0
    %p93 = por %p91, %p92
    %p94 = scmp.le.s32.totalorder 1, %s8
    %p95 = scmp.lt.s32.totalorder %s8, 3
    %p96 = pnand %p94, %p95
    %p97 = pneg %p96
    // Predicated region
    $region9: #{tpu_custom_call.1} parent=5 // pred_check
      _
    $region10: #{tpu_custom_call.1} parent=5 // pred_check_branch
      %99 = sbr.rel (%p96) target = $region12
    $region11: #{tpu_custom_call.1} parent=5 // pred_region
      %s100 = ssub.s32 %s8, 1
    $region12: #{tpu_custom_call.1} parent=5 // pred_fallthru
      _
    %p101 = scmp.lt.s32.totalorder %s8, 2
    // Predicated region
    $region13: #{tpu_custom_call.1} parent=5 // pred_check
      %p102 = pneg %p101
    $region14: #{tpu_custom_call.1} parent=5 // pred_check_branch
      %104 = sbr.rel (%p102) target = $region16
    $region15: #{tpu_custom_call.1} parent=5 // pred_region
      // Predicated region
      $region17: #{tpu_custom_call.1} parent=15 // pred_check
        %p105 = pneg %p28
      $region18: #{tpu_custom_call.1} parent=15 // pred_check_branch
        %107 = sbr.rel (%p105) target = $region20
      $region19: #{tpu_custom_call.1} parent=15 // pred_region
        %s108 = smul.u32 32, %s8
        %p109 = scmp.lt.s32.totalorder %s108, 63
        %s110 = scalar_select %p109, %s108, 63
        %s111 = smul.addr %s110, 8
        %s112 = scalar_lea.vmem %s0, %s111
        %s113 = smul.u32 32, %s8
      $region20: #{tpu_custom_call.1} parent=15 // pred_fallthru
        _
      // Predicated region
      $region21: #{tpu_custom_call.1} parent=15 // pred_check
        %p114 = pneg %p54
      $region22: #{tpu_custom_call.1} parent=15 // pred_check_branch
        %116 = sbr.rel (%p114) target = $region24
      $region23: #{tpu_custom_call.1} parent=15 // pred_region
        %s117 = smul.u32 32, %s8
        %p118 = scmp.lt.s32.totalorder %s117, 63
        %s119 = scalar_select %p118, %s117, 63
        %s120 = smul.addr %s119, 8
        %s121 = scalar_lea.vmem %s1, %s120
        %s122 = smul.u32 32, %s8
      $region24: #{tpu_custom_call.1} parent=15 // pred_fallthru
        _
    $region16: #{tpu_custom_call.1} parent=5 // pred_fallthru
      _
    %p123 = scmp.le.s32.totalorder 1, %s8
    %p124 = scmp.lt.s32.totalorder %s8, 3
    %p125 = pnand %p123, %p124
    %p126 = pneg %p125
    // Predicated region
    $region25: #{tpu_custom_call.1} parent=5 // pred_check
      _
    $region26: #{tpu_custom_call.1} parent=5 // pred_check_branch
      %128 = sbr.rel (%p125) target = $region28
    $region27: #{tpu_custom_call.1} parent=5 // pred_region
      %s129 = ssub.s32 %s8, 1
      %s130 = smul.u32 32, %s13
      %p131 = scmp.lt.s32.totalorder %s130, 63
      %s132 = scalar_select %p131, %s130, 63
      %s133 = smul.addr %s132, 8
      %s134 = scalar_lea.vmem %s0, %s133
      %p135 = pneg %p34
      %p136 = pneg %p31
      %s137 = smul.u32 32, %s13
      %p138 = scmp.lt.s32.totalorder %s137, 63
      %s139 = scalar_select %p138, %s137, 63
      %s140 = smul.addr %s139, 8
      %s141 = scalar_lea.vmem %s1, %s140
      %p142 = pneg %p60
      %p143 = pneg %p57
      %p144 = pneg %p86
      %p145 = pneg %p83
      %s146 = smul.u32 32, %s13
      %p147 = scmp.lt.s32.totalorder %s146, 63
      %s148 = scalar_select %p147, %s146, 63
      %s149 = smul.addr %s148, 4
      %s150 = scalar_lea.vmem %s2, %s149
      %s151 = smul.u32 32, %s13
      %p152 = scmp.lt.s32.totalorder %s151, 63
      %s153 = scalar_select %p152, %s151, 63
      %s154 = smul.addr %s153, 8
      %s155 = scalar_lea.vmem %s0, %s154
      %s156 = smul.u32 32, %s13
      %s157 = smul.u32 32, %s13
      %p158 = scmp.lt.s32.totalorder %s157, 63
      %s159 = scalar_select %p158, %s157, 63
      %s160 = smul.addr %s159, 8
      %s161 = scalar_lea.vmem %s1, %s160
      %s162 = smul.u32 32, %s13
      %s163 = smul.u32 32, %s13
      %p164 = scmp.lt.s32.totalorder %s163, 63
      %s165 = scalar_select %p164, %s163, 63
      %s166 = smul.addr %s165, 4
      %s167 = scalar_lea.vmem %s2, %s166
      %s168 = smul.u32 32, %s13
      %v169 = vld [vmem:[%s155] sm:$0xff]
      %v170 = vld [vmem:[%s155 + $0x8] sm:$0xff]
      %v171 = vld [vmem:[%s155 + $0x10] sm:$0xff]
      %v172 = vld [vmem:[%s155 + $0x18] sm:$0xff]
      %v173 = vld [vmem:[%s155 + $0x20] sm:$0xff]
      %v174 = vld [vmem:[%s155 + $0x28] sm:$0xff]
      %v175 = vld [vmem:[%s155 + $0x30] sm:$0xff]
      %v176 = vld [vmem:[%s155 + $0x38] sm:$0xff]
      %v177 = vld [vmem:[%s155 + $0x40] sm:$0xff]
      %v178 = vld [vmem:[%s155 + $0x48] sm:$0xff]
      %v179 = vld [vmem:[%s155 + $0x50] sm:$0xff]
      %v180 = vld [vmem:[%s155 + $0x58] sm:$0xff]
      %v181 = vld [vmem:[%s155 + $0x60] sm:$0xff]
      %v182 = vld [vmem:[%s155 + $0x68] sm:$0xff]
      %v183 = vld [vmem:[%s155 + $0x70] sm:$0xff]
      %v184 = vld [vmem:[%s155 + $0x78] sm:$0xff]
      %v185 = vld [vmem:[%s155 + $0x80] sm:$0xff]
      %v186 = vld [vmem:[%s155 + $0x88] sm:$0xff]
      %v187 = vld [vmem:[%s155 + $0x90] sm:$0xff]
      %v188 = vld [vmem:[%s155 + $0x98] sm:$0xff]
      %v189 = vld [vmem:[%s155 + $0xa0] sm:$0xff]
      %v190 = vld [vmem:[%s155 + $0xa8] sm:$0xff]
      %v191 = vld [vmem:[%s155 + $0xb0] sm:$0xff]
      %v192 = vld [vmem:[%s155 + $0xb8] sm:$0xff]
      %v193 = vld [vmem:[%s155 + $0xc0] sm:$0xff]
      %v194 = vld [vmem:[%s155 + $0xc8] sm:$0xff]
      %v195 = vld [vmem:[%s155 + $0xd0] sm:$0xff]
      %v196 = vld [vmem:[%s155 + $0xd8] sm:$0xff]
      %v197 = vld [vmem:[%s155 + $0xe0] sm:$0xff]
      %v198 = vld [vmem:[%s155 + $0xe8] sm:$0xff]
      %v199 = vld [vmem:[%s155 + $0xf0] sm:$0xff]
      %v200 = vld [vmem:[%s155 + $0xf8] sm:$0xff]
      %v201 = vmul.f32 %v169, 1.442695
      %v202 = vpow.pop %v201
      %v203 = vmul.f32 %v170, 1.442695
      %v204 = vpow.pop %v203
      %v205 = vmul.f32 %v171, 1.442695
      %v206 = vpow.pop %v205
      %v207 = vmul.f32 %v172, 1.442695
      %v208 = vpow.pop %v207
      %v209 = vmul.f32 %v173, 1.442695
      %v210 = vpow.pop %v209
      %v211 = vmul.f32 %v174, 1.442695
      %v212 = vpow.pop %v211
      %v213 = vmul.f32 %v175, 1.442695
      %v214 = vpow.pop %v213
      %v215 = vmul.f32 %v176, 1.442695
      %v216 = vpow.pop %v215
      %v217 = vmul.f32 %v177, 1.442695
      %v218 = vpow.pop %v217
      %v219 = vmul.f32 %v178, 1.442695
      %v220 = vpow.pop %v219
      %v221 = vmul.f32 %v179, 1.442695
      %v222 = vpow.pop %v221
      %v223 = vmul.f32 %v180, 1.442695
      %v224 = vpow.pop %v223
      %v225 = vmul.f32 %v181, 1.442695
      %v226 = vpow.pop %v225
      %v227 = vmul.f32 %v182, 1.442695
      %v228 = vpow.pop %v227
      %v229 = vmul.f32 %v183, 1.442695
      %v230 = vpow.pop %v229
      %v231 = vmul.f32 %v184, 1.442695
      %v232 = vpow.pop %v231
      %v233 = vmul.f32 %v185, 1.442695
      %v234 = vpow.pop %v233
      %v235 = vmul.f32 %v186, 1.442695
      %v236 = vpow.pop %v235
      %v237 = vmul.f32 %v187, 1.442695
      %v238 = vpow.pop %v237
      %v239 = vmul.f32 %v188, 1.442695
      %v240 = vpow.pop %v239
      %v241 = vmul.f32 %v189, 1.442695
      %v242 = vpow.pop %v241
      %v243 = vmul.f32 %v190, 1.442695
      %v244 = vpow.pop %v243
      %v245 = vmul.f32 %v191, 1.442695
      %v246 = vpow.pop %v245
      %v247 = vmul.f32 %v192, 1.442695
      %v248 = vpow.pop %v247
      %v249 = vmul.f32 %v193, 1.442695
      %v250 = vpow.pop %v249
      %v251 = vmul.f32 %v194, 1.442695
      %v252 = vpow.pop %v251
      %v253 = vmul.f32 %v195, 1.442695
      %v254 = vpow.pop %v253
      %v255 = vmul.f32 %v196, 1.442695
      %v256 = vpow.pop %v255
      %v257 = vmul.f32 %v197, 1.442695
      %v258 = vpow.pop %v257
      %v259 = vmul.f32 %v198, 1.442695
      %v260 = vpow.pop %v259
      %v261 = vmul.f32 %v199, 1.442695
      %v262 = vpow.pop %v261
      %v263 = vmul.f32 %v200, 1.442695
      %v264 = vpow.pop %v263
      %v265 = vadd.f32 %v202, 1.0
      %v266 = vadd.f32 %v204, 1.0
      %v267 = vadd.f32 %v206, 1.0
      %v268 = vadd.f32 %v208, 1.0
      %v269 = vadd.f32 %v210, 1.0
      %v270 = vadd.f32 %v212, 1.0
      %v271 = vadd.f32 %v214, 1.0
      %v272 = vadd.f32 %v216, 1.0
      %v273 = vadd.f32 %v218, 1.0
      %v274 = vadd.f32 %v220, 1.0
      %v275 = vadd.f32 %v222, 1.0
      %v276 = vadd.f32 %v224, 1.0
      %v277 = vadd.f32 %v226, 1.0
      %v278 = vadd.f32 %v228, 1.0
      %v279 = vadd.f32 %v230, 1.0
      %v280 = vadd.f32 %v232, 1.0
      %v281 = vadd.f32 %v234, 1.0
      %v282 = vadd.f32 %v236, 1.0
      %v283 = vadd.f32 %v238, 1.0
      %v284 = vadd.f32 %v240, 1.0
      %v285 = vadd.f32 %v242, 1.0
      %v286 = vadd.f32 %v244, 1.0
      %v287 = vadd.f32 %v246, 1.0
      %v288 = vadd.f32 %v248, 1.0
      %v289 = vadd.f32 %v250, 1.0
      %v290 = vadd.f32 %v252, 1.0
      %v291 = vadd.f32 %v254, 1.0
      %v292 = vadd.f32 %v256, 1.0
      %v293 = vadd.f32 %v258, 1.0
      %v294 = vadd.f32 %v260, 1.0
      %v295 = vadd.f32 %v262, 1.0
      %v296 = vadd.f32 %v264, 1.0
      %v297 = vrcp.pop %v265
      %v298 = vmul.f32 1.0, %v297
      %v299 = vrcp.pop %v266
      %v300 = vmul.f32 1.0, %v299
      %v301 = vrcp.pop %v267
      %v302 = vmul.f32 1.0, %v301
      %v303 = vrcp.pop %v268
      %v304 = vmul.f32 1.0, %v303
      %v305 = vrcp.pop %v269
      %v306 = vmul.f32 1.0, %v305
      %v307 = vrcp.pop %v270
      %v308 = vmul.f32 1.0, %v307
      %v309 = vrcp.pop %v271
      %v310 = vmul.f32 1.0, %v309
      %v311 = vrcp.pop %v272
      %v312 = vmul.f32 1.0, %v311
      %v313 = vrcp.pop %v273
      %v314 = vmul.f32 1.0, %v313
      %v315 = vrcp.pop %v274
      %v316 = vmul.f32 1.0, %v315
      %v317 = vrcp.pop %v275
      %v318 = vmul.f32 1.0, %v317
      %v319 = vrcp.pop %v276
      %v320 = vmul.f32 1.0, %v319
      %v321 = vrcp.pop %v277
      %v322 = vmul.f32 1.0, %v321
      %v323 = vrcp.pop %v278
      %v324 = vmul.f32 1.0, %v323
      %v325 = vrcp.pop %v279
      %v326 = vmul.f32 1.0, %v325
      %v327 = vrcp.pop %v280
      %v328 = vmul.f32 1.0, %v327
      %v329 = vrcp.pop %v281
      %v330 = vmul.f32 1.0, %v329
      %v331 = vrcp.pop %v282
      %v332 = vmul.f32 1.0, %v331
      %v333 = vrcp.pop %v283
      %v334 = vmul.f32 1.0, %v333
      %v335 = vrcp.pop %v284
      %v336 = vmul.f32 1.0, %v335
      %v337 = vrcp.pop %v285
      %v338 = vmul.f32 1.0, %v337
      %v339 = vrcp.pop %v286
      %v340 = vmul.f32 1.0, %v339
      %v341 = vrcp.pop %v287
      %v342 = vmul.f32 1.0, %v341
      %v343 = vrcp.pop %v288
      %v344 = vmul.f32 1.0, %v343
      %v345 = vrcp.pop %v289
      %v346 = vmul.f32 1.0, %v345
      %v347 = vrcp.pop %v290
      %v348 = vmul.f32 1.0, %v347
      %v349 = vrcp.pop %v291
      %v350 = vmul.f32 1.0, %v349
      %v351 = vrcp.pop %v292
      %v352 = vmul.f32 1.0, %v351
      %v353 = vrcp.pop %v293
      %v354 = vmul.f32 1.0, %v353
      %v355 = vrcp.pop %v294
      %v356 = vmul.f32 1.0, %v355
      %v357 = vrcp.pop %v295
      %v358 = vmul.f32 1.0, %v357
      %v359 = vrcp.pop %v296
      %v360 = vmul.f32 1.0, %v359
      %v361 = vld [vmem:[%s161] sm:$0xff]
      %v362 = vld [vmem:[%s161 + $0x8] sm:$0xff]
      %v363 = vld [vmem:[%s161 + $0x10] sm:$0xff]
      %v364 = vld [vmem:[%s161 + $0x18] sm:$0xff]
      %v365 = vld [vmem:[%s161 + $0x20] sm:$0xff]
      %v366 = vld [vmem:[%s161 + $0x28] sm:$0xff]
      %v367 = vld [vmem:[%s161 + $0x30] sm:$0xff]
      %v368 = vld [vmem:[%s161 + $0x38] sm:$0xff]
      %v369 = vld [vmem:[%s161 + $0x40] sm:$0xff]
      %v370 = vld [vmem:[%s161 + $0x48] sm:$0xff]
      %v371 = vld [vmem:[%s161 + $0x50] sm:$0xff]
      %v372 = vld [vmem:[%s161 + $0x58] sm:$0xff]
      %v373 = vld [vmem:[%s161 + $0x60] sm:$0xff]
      %v374 = vld [vmem:[%s161 + $0x68] sm:$0xff]
      %v375 = vld [vmem:[%s161 + $0x70] sm:$0xff]
      %v376 = vld [vmem:[%s161 + $0x78] sm:$0xff]
      %v377 = vld [vmem:[%s161 + $0x80] sm:$0xff]
      %v378 = vld [vmem:[%s161 + $0x88] sm:$0xff]
      %v379 = vld [vmem:[%s161 + $0x90] sm:$0xff]
      %v380 = vld [vmem:[%s161 + $0x98] sm:$0xff]
      %v381 = vld [vmem:[%s161 + $0xa0] sm:$0xff]
      %v382 = vld [vmem:[%s161 + $0xa8] sm:$0xff]
      %v383 = vld [vmem:[%s161 + $0xb0] sm:$0xff]
      %v384 = vld [vmem:[%s161 + $0xb8] sm:$0xff]
      %v385 = vld [vmem:[%s161 + $0xc0] sm:$0xff]
      %v386 = vld [vmem:[%s161 + $0xc8] sm:$0xff]
      %v387 = vld [vmem:[%s161 + $0xd0] sm:$0xff]
      %v388 = vld [vmem:[%s161 + $0xd8] sm:$0xff]
      %v389 = vld [vmem:[%s161 + $0xe0] sm:$0xff]
      %v390 = vld [vmem:[%s161 + $0xe8] sm:$0xff]
      %v391 = vld [vmem:[%s161 + $0xf0] sm:$0xff]
      %v392 = vld [vmem:[%s161 + $0xf8] sm:$0xff]
      %394 = vset.pattern.permute.xlu0 0
      %395 = vperm.xlu0 %394, %v298
      %v396 = vpop.permute.xlu0 %395
      %399 = vset.pattern.permute.xlu0 0
      %400 = vperm.xlu0 %399, %v300
      %v401 = vpop.permute.xlu0 %400
      %404 = vset.pattern.permute.xlu0 0
      %405 = vperm.xlu0 %404, %v302
      %v406 = vpop.permute.xlu0 %405
      %409 = vset.pattern.permute.xlu0 0
      %410 = vperm.xlu0 %409, %v304
      %v411 = vpop.permute.xlu0 %410
      %414 = vset.pattern.permute.xlu0 0
      %415 = vperm.xlu0 %414, %v306
      %v416 = vpop.permute.xlu0 %415
      %419 = vset.pattern.permute.xlu0 0
      %420 = vperm.xlu0 %419, %v308
      %v421 = vpop.permute.xlu0 %420
      %424 = vset.pattern.permute.xlu0 0
      %425 = vperm.xlu0 %424, %v310
      %v426 = vpop.permute.xlu0 %425
      %429 = vset.pattern.permute.xlu0 0
      %430 = vperm.xlu0 %429, %v312
      %v431 = vpop.permute.xlu0 %430
      %434 = vset.pattern.permute.xlu0 0
      %435 = vperm.xlu0 %434, %v314
      %v436 = vpop.permute.xlu0 %435
      %439 = vset.pattern.permute.xlu0 0
      %440 = vperm.xlu0 %439, %v316
      %v441 = vpop.permute.xlu0 %440
      %444 = vset.pattern.permute.xlu0 0
      %445 = vperm.xlu0 %444, %v318
      %v446 = vpop.permute.xlu0 %445
      %449 = vset.pattern.permute.xlu0 0
      %450 = vperm.xlu0 %449, %v320
      %v451 = vpop.permute.xlu0 %450
      %454 = vset.pattern.permute.xlu0 0
      %455 = vperm.xlu0 %454, %v322
      %v456 = vpop.permute.xlu0 %455
      %459 = vset.pattern.permute.xlu0 0
      %460 = vperm.xlu0 %459, %v324
      %v461 = vpop.permute.xlu0 %460
      %464 = vset.pattern.permute.xlu0 0
      %465 = vperm.xlu0 %464, %v326
      %v466 = vpop.permute.xlu0 %465
      %469 = vset.pattern.permute.xlu0 0
      %470 = vperm.xlu0 %469, %v328
      %v471 = vpop.permute.xlu0 %470
      %474 = vset.pattern.permute.xlu0 0
      %475 = vperm.xlu0 %474, %v330
      %v476 = vpop.permute.xlu0 %475
      %479 = vset.pattern.permute.xlu0 0
      %480 = vperm.xlu0 %479, %v332
      %v481 = vpop.permute.xlu0 %480
      %484 = vset.pattern.permute.xlu0 0
      %485 = vperm.xlu0 %484, %v334
      %v486 = vpop.permute.xlu0 %485
      %489 = vset.pattern.permute.xlu0 0
      %490 = vperm.xlu0 %489, %v336
      %v491 = vpop.permute.xlu0 %490
      %494 = vset.pattern.permute.xlu0 0
      %495 = vperm.xlu0 %494, %v338
      %v496 = vpop.permute.xlu0 %495
      %499 = vset.pattern.permute.xlu0 0
      %500 = vperm.xlu0 %499, %v340
      %v501 = vpop.permute.xlu0 %500
      %504 = vset.pattern.permute.xlu0 0
      %505 = vperm.xlu0 %504, %v342
      %v506 = vpop.permute.xlu0 %505
      %509 = vset.pattern.permute.xlu0 0
      %510 = vperm.xlu0 %509, %v344
      %v511 = vpop.permute.xlu0 %510
      %514 = vset.pattern.permute.xlu0 0
      %515 = vperm.xlu0 %514, %v346
      %v516 = vpop.permute.xlu0 %515
      %519 = vset.pattern.permute.xlu0 0
      %520 = vperm.xlu0 %519, %v348
      %v521 = vpop.permute.xlu0 %520
      %524 = vset.pattern.permute.xlu0 0
      %525 = vperm.xlu0 %524, %v350
      %v526 = vpop.permute.xlu0 %525
      %529 = vset.pattern.permute.xlu0 0
      %530 = vperm.xlu0 %529, %v352
      %v531 = vpop.permute.xlu0 %530
      %534 = vset.pattern.permute.xlu0 0
      %535 = vperm.xlu0 %534, %v354
      %v536 = vpop.permute.xlu0 %535
      %539 = vset.pattern.permute.xlu0 0
      %540 = vperm.xlu0 %539, %v356
      %v541 = vpop.permute.xlu0 %540
      %544 = vset.pattern.permute.xlu0 0
      %545 = vperm.xlu0 %544, %v358
      %v546 = vpop.permute.xlu0 %545
      %549 = vset.pattern.permute.xlu0 0
      %550 = vperm.xlu0 %549, %v360
      %v551 = vpop.permute.xlu0 %550
      %v553 = vmul.f32 %v396, %v361
      %v554 = vmul.f32 %v401, %v362
      %v555 = vmul.f32 %v406, %v363
      %v556 = vmul.f32 %v411, %v364
      %v557 = vmul.f32 %v416, %v365
      %v558 = vmul.f32 %v421, %v366
      %v559 = vmul.f32 %v426, %v367
      %v560 = vmul.f32 %v431, %v368
      %v561 = vmul.f32 %v436, %v369
      %v562 = vmul.f32 %v441, %v370
      %v563 = vmul.f32 %v446, %v371
      %v564 = vmul.f32 %v451, %v372
      %v565 = vmul.f32 %v456, %v373
      %v566 = vmul.f32 %v461, %v374
      %v567 = vmul.f32 %v466, %v375
      %v568 = vmul.f32 %v471, %v376
      %v569 = vmul.f32 %v476, %v377
      %v570 = vmul.f32 %v481, %v378
      %v571 = vmul.f32 %v486, %v379
      %v572 = vmul.f32 %v491, %v380
      %v573 = vmul.f32 %v496, %v381
      %v574 = vmul.f32 %v501, %v382
      %v575 = vmul.f32 %v506, %v383
      %v576 = vmul.f32 %v511, %v384
      %v577 = vmul.f32 %v516, %v385
      %v578 = vmul.f32 %v521, %v386
      %v579 = vmul.f32 %v526, %v387
      %v580 = vmul.f32 %v531, %v388
      %v581 = vmul.f32 %v536, %v389
      %v582 = vmul.f32 %v541, %v390
      %v583 = vmul.f32 %v546, %v391
      %v584 = vmul.f32 %v551, %v392
      %v585 = vpack.c.bf16 %v554, %v553
      %v586 = vpack.c.bf16 %v556, %v555
      %v587 = vpack.c.bf16 %v558, %v557
      %v588 = vpack.c.bf16 %v560, %v559
      %v589 = vpack.c.bf16 %v562, %v561
      %v590 = vpack.c.bf16 %v564, %v563
      %v591 = vpack.c.bf16 %v566, %v565
      %v592 = vpack.c.bf16 %v568, %v567
      %v593 = vpack.c.bf16 %v570, %v569
      %v594 = vpack.c.bf16 %v572, %v571
      %v595 = vpack.c.bf16 %v574, %v573
      %v596 = vpack.c.bf16 %v576, %v575
      %v597 = vpack.c.bf16 %v578, %v577
      %v598 = vpack.c.bf16 %v580, %v579
      %v599 = vpack.c.bf16 %v582, %v581
      %v600 = vpack.c.bf16 %v584, %v583
      %v617 = vunpack.c.l.b16 %v585
      %v618 = vunpack.c.h.b16 %v585
      %v619 = vunpack.c.l.b16 %v586
      %v620 = vunpack.c.h.b16 %v586
      %v621 = vunpack.c.l.b16 %v587
      %v622 = vunpack.c.h.b16 %v587
      %v623 = vunpack.c.l.b16 %v588
      %v624 = vunpack.c.h.b16 %v588
      %v625 = vunpack.c.l.b16 %v589
      %v626 = vunpack.c.h.b16 %v589
      %v627 = vunpack.c.l.b16 %v590
      %v628 = vunpack.c.h.b16 %v590
      %v629 = vunpack.c.l.b16 %v591
      %v630 = vunpack.c.h.b16 %v591
      %v631 = vunpack.c.l.b16 %v592
      %v632 = vunpack.c.h.b16 %v592
      %v633 = vunpack.c.l.b16 %v593
      %v634 = vunpack.c.h.b16 %v593
      %v635 = vunpack.c.l.b16 %v594
      %v636 = vunpack.c.h.b16 %v594
      %v637 = vunpack.c.l.b16 %v595
      %v638 = vunpack.c.h.b16 %v595
      %v639 = vunpack.c.l.b16 %v596
      %v640 = vunpack.c.h.b16 %v596
      %v641 = vunpack.c.l.b16 %v597
      %v642 = vunpack.c.h.b16 %v597
      %v643 = vunpack.c.l.b16 %v598
      %v644 = vunpack.c.h.b16 %v598
      %v645 = vunpack.c.l.b16 %v599
      %v646 = vunpack.c.h.b16 %v599
      %v647 = vunpack.c.l.b16 %v600
      %v648 = vunpack.c.h.b16 %v600
      %v649 = vpack.c.b16 %v617, %v617
      %v650 = vpack.c.b16 %v618, %v618
      %v651 = vpack.c.b16 %v619, %v619
      %v652 = vpack.c.b16 %v620, %v620
      %v653 = vpack.c.b16 %v621, %v621
      %v654 = vpack.c.b16 %v622, %v622
      %v655 = vpack.c.b16 %v623, %v623
      %v656 = vpack.c.b16 %v624, %v624
      %v657 = vpack.c.b16 %v625, %v625
      %v658 = vpack.c.b16 %v626, %v626
      %v659 = vpack.c.b16 %v627, %v627
      %v660 = vpack.c.b16 %v628, %v628
      %v661 = vpack.c.b16 %v629, %v629
      %v662 = vpack.c.b16 %v630, %v630
      %v663 = vpack.c.b16 %v631, %v631
      %v664 = vpack.c.b16 %v632, %v632
      %v665 = vpack.c.b16 %v633, %v633
      %v666 = vpack.c.b16 %v634, %v634
      %v667 = vpack.c.b16 %v635, %v635
      %v668 = vpack.c.b16 %v636, %v636
      %v669 = vpack.c.b16 %v637, %v637
      %v670 = vpack.c.b16 %v638, %v638
      %v671 = vpack.c.b16 %v639, %v639
      %v672 = vpack.c.b16 %v640, %v640
      %v673 = vpack.c.b16 %v641, %v641
      %v674 = vpack.c.b16 %v642, %v642
      %v675 = vpack.c.b16 %v643, %v643
      %v676 = vpack.c.b16 %v644, %v644
      %v677 = vpack.c.b16 %v645, %v645
      %v678 = vpack.c.b16 %v646, %v646
      %v679 = vpack.c.b16 %v647, %v647
      %v680 = vpack.c.b16 %v648, %v648
      %vm713 = vcmask 27648
      %714 = vst.msk [vmem:[%s167] sm:$0xf] %vm713, %v649
      %715 = vst.msk [vmem:[%s167 + $0x4] sm:$0xf] %vm713, %v650
      %716 = vst.msk [vmem:[%s167 + $0x8] sm:$0xf] %vm713, %v651
      %717 = vst.msk [vmem:[%s167 + $0xc] sm:$0xf] %vm713, %v652
      %718 = vst.msk [vmem:[%s167 + $0x10] sm:$0xf] %vm713, %v653
      %719 = vst.msk [vmem:[%s167 + $0x14] sm:$0xf] %vm713, %v654
      %720 = vst.msk [vmem:[%s167 + $0x18] sm:$0xf] %vm713, %v655
      %721 = vst.msk [vmem:[%s167 + $0x1c] sm:$0xf] %vm713, %v656
      %722 = vst.msk [vmem:[%s167 + $0x20] sm:$0xf] %vm713, %v657
      %723 = vst.msk [vmem:[%s167 + $0x24] sm:$0xf] %vm713, %v658
      %724 = vst.msk [vmem:[%s167 + $0x28] sm:$0xf] %vm713, %v659
      %725 = vst.msk [vmem:[%s167 + $0x2c] sm:$0xf] %vm713, %v660
      %726 = vst.msk [vmem:[%s167 + $0x30] sm:$0xf] %vm713, %v661
      %727 = vst.msk [vmem:[%s167 + $0x34] sm:$0xf] %vm713, %v662
      %728 = vst.msk [vmem:[%s167 + $0x38] sm:$0xf] %vm713, %v663
      %729 = vst.msk [vmem:[%s167 + $0x3c] sm:$0xf] %vm713, %v664
      %730 = vst.msk [vmem:[%s167 + $0x40] sm:$0xf] %vm713, %v665
      %731 = vst.msk [vmem:[%s167 + $0x44] sm:$0xf] %vm713, %v666
      %732 = vst.msk [vmem:[%s167 + $0x48] sm:$0xf] %vm713, %v667
      %733 = vst.msk [vmem:[%s167 + $0x4c] sm:$0xf] %vm713, %v668
      %734 = vst.msk [vmem:[%s167 + $0x50] sm:$0xf] %vm713, %v669
      %735 = vst.msk [vmem:[%s167 + $0x54] sm:$0xf] %vm713, %v670
      %736 = vst.msk [vmem:[%s167 + $0x58] sm:$0xf] %vm713, %v671
      %737 = vst.msk [vmem:[%s167 + $0x5c] sm:$0xf] %vm713, %v672
      %738 = vst.msk [vmem:[%s167 + $0x60] sm:$0xf] %vm713, %v673
      %739 = vst.msk [vmem:[%s167 + $0x64] sm:$0xf] %vm713, %v674
      %740 = vst.msk [vmem:[%s167 + $0x68] sm:$0xf] %vm713, %v675
      %741 = vst.msk [vmem:[%s167 + $0x6c] sm:$0xf] %vm713, %v676
      %742 = vst.msk [vmem:[%s167 + $0x70] sm:$0xf] %vm713, %v677
      %743 = vst.msk [vmem:[%s167 + $0x74] sm:$0xf] %vm713, %v678
      %744 = vst.msk [vmem:[%s167 + $0x78] sm:$0xf] %vm713, %v679
      %745 = vst.msk [vmem:[%s167 + $0x7c] sm:$0xf] %vm713, %v680
      %s746 = smul.u32 32, %s13
      %p747 = scmp.lt.s32.totalorder %s746, 63
      %s748 = scalar_select %p747, %s746, 63
      %s749 = smul.addr %s748, 4
      %s750 = scalar_lea.vmem %s2, %s749
      // Predicated region
      $region29: #{tpu_custom_call.1} parent=27 // pred_check
        %p751 = pneg %p83
      $region30: #{tpu_custom_call.1} parent=27 // pred_check_branch
        %753 = sbr.rel (%p751) target = $region32
      $region31: #{tpu_custom_call.1} parent=27 // pred_region
        %s754 = smul.u32 32, %s13
      $region32: #{tpu_custom_call.1} parent=27 // pred_fallthru
        _
    $region28: #{tpu_custom_call.1} parent=5 // pred_fallthru
      _
    %p755 = scmp.le.s32.totalorder 2, %s8
    // Predicated region
    $region33: #{tpu_custom_call.1} parent=5 // pred_check
      %p756 = pneg %p755
    $region34: #{tpu_custom_call.1} parent=5 // pred_check_branch
      %758 = sbr.rel (%p756) target = $region36
    $region35: #{tpu_custom_call.1} parent=5 // pred_region
      %s759 = ssub.s32 %s8, 2
      // Predicated region
      $region37: #{tpu_custom_call.1} parent=35 // pred_check
        %p760 = pneg %p89
      $region38: #{tpu_custom_call.1} parent=35 // pred_check_branch
        %762 = sbr.rel (%p760) target = $region40
      $region39: #{tpu_custom_call.1} parent=35 // pred_region
        %s763 = smul.u32 32, %s14
        %p764 = scmp.lt.s32.totalorder %s763, 63
        %s765 = scalar_select %p764, %s763, 63
        %s766 = smul.addr %s765, 4
        %s767 = scalar_lea.vmem %s2, %s766
      $region40: #{tpu_custom_call.1} parent=35 // pred_fallthru
        _
    $region36: #{tpu_custom_call.1} parent=5 // pred_fallthru
      _
  $region6: #{tpu_custom_call.1} parent=0 // loop_footer
    %s12 = sadd.s32 1, %s8
  $region7: #{tpu_custom_call.1} parent=0 // loop_footer_branch
    %7 = sbr.rel target = $region3
  $region8: #{tpu_custom_call.1} parent=0 // loop_exit
    _

</llo_original>
